<compile_context>
chip_gen: v7x
topology: tpu7x:2x2x1
jax: 0.10.0
libtpu: 0.0.40
codegen_flags: <defaults>
</compile_context>

<pallas_src>
import functools

import jax
import jax.numpy as jnp
from jax import lax
from jax.experimental import pallas as pl
from jax.experimental.pallas import tpu as pltpu

D_IN = 64
D_H = 128


def _gelu_exact(x):
    # Matches torch.nn.GELU() default (erf-based).
    return 0.5 * x * (1.0 + lax.erf(x * 0.7071067811865476))


def _gelu_tanh(x):
    # tanh approximation (transcendental rides the EUP slot).
    c = 0.7978845608028654  # sqrt(2/pi)
    return 0.5 * x * (1.0 + jnp.tanh(c * (x + 0.044715 * x * x * x)))


def mlp_head_kernel(x_ref, w1_ref, b1_ref, w2_ref, b2_ref, w3_ref, b3_ref,
                    out_ref, *, approximate_gelu):
    gelu = _gelu_tanh if approximate_gelu else _gelu_exact
    cdt = w1_ref.dtype   # matmul input dtype (f32 or bf16); f32 accumulation always
    adt = b1_ref.dtype   # bias-add / GELU dtype (bf16 on v6e/v7x fast path)

    # x tile in natural [TB, 64] layout; bf16 cast happens in-register (no
    # extra HBM pass).  Transpose is folded into the dot (contract last dims).
    x = x_ref[...].astype(cdt)

    # dnn1: w1[128,64] . x[TB,64]^T -> [128, TB]  (batch stays on lanes)
    h1 = lax.dot_general(w1_ref[...], x, (((1,), (1,)), ((), ())),
                         preferred_element_type=jnp.float32)
    h1 = gelu(h1.astype(adt) + b1_ref[...])            # bias column broadcasts over lanes

    # dnn2: w2[128,128] . h1[128,TB] -> [128, TB]
    h2 = jnp.dot(w2_ref[...], h1.astype(cdt), preferred_element_type=jnp.float32)
    h2 = gelu(h2.astype(adt) + b2_ref[...])

    # output layer 128 -> 1 on the (idle) MXU: [1,128] . [128,TB] -> [1, TB],
    # already lane-dense for the store.
    logits = jnp.dot(w3_ref[...], h2.astype(cdt),
                     preferred_element_type=jnp.float32) + b3_ref[...]

    out_ref[...] = jax.nn.sigmoid(logits).astype(out_ref.dtype)


@functools.partial(jax.jit,
                   static_argnames=("block_b", "use_bf16", "bf16_act",
                                    "approximate_gelu"))
def mlp_head_forward(x, w1, b1, w2, b2, w3, b3, *,
                     block_b=2048, use_bf16=True, bf16_act=True,
                     approximate_gelu=True):
    """x: [B, 64] float32 -> y_hat: [B] float32 (sigmoid probabilities).

    Weights use the PyTorch layout: w1 = dnn1.weight [128, 64],
    w2 = dnn2.weight [128, 128], w3 = output.weight [1, 128];
    biases as columns b1/b2 [128, 1], b3 [1, 1].

    Flags: use_bf16 -> bf16 MXU path with f32 accumulation (recommended on all
    generations); bf16_act -> bias+GELU in bf16 (set False on v5e: no bf16
    VPU/EUP); approximate_gelu=False -> exact erf GELU (torch parity).
    """
    B, d_in = x.shape
    assert d_in == D_IN

    # Lane-aligned batch tile; keep the grid at >= 2 steps when the batch
    # allows (v7x megacore) and don't over-allocate for tiny batches.
    block_b = max(128, (int(block_b) // 128) * 128)
    b128 = pl.cdiv(B, 128) * 128
    if b128 >= 256:
        block_b = min(block_b, max(128, (b128 // 256) * 128))   # ~half, lane-aligned
    else:
        block_b = 128
    B_pad = pl.cdiv(B, block_b) * block_b
    n_blocks = B_pad // block_b

    # Pad the batch only (no transpose, no dtype cast: x is read once, f32).
    xp = x if B_pad == B else jnp.pad(x, ((0, B_pad - B), (0, 0)))

    cdt = jnp.bfloat16 if use_bf16 else jnp.float32
    adt = jnp.bfloat16 if (use_bf16 and bf16_act) else jnp.float32
    w1c = w1.astype(cdt)
    w2c = w2.astype(cdt)
    w3c = w3.astype(cdt)
    b1c = b1.astype(adt)
    b2c = b2.astype(adt)

    kernel = functools.partial(mlp_head_kernel, approximate_gelu=approximate_gelu)

    out = pl.pallas_call(
        kernel,
        out_shape=jax.ShapeDtypeStruct((1, B_pad), jnp.float32),
        grid_spec=pl.GridSpec(
            grid=(n_blocks,),
            in_specs=[
                # x tile, natural layout.  If profiling shows the x DMA exposed
                # after the cheap-GELU change, add pipeline_mode=pl.Buffered(3).
                pl.BlockSpec((block_b, D_IN), lambda i: (i, 0)),
                pl.BlockSpec((D_H, D_IN), lambda i: (0, 0)),   # w1 [128,64] (VMEM-resident)
                pl.BlockSpec((D_H, 1), lambda i: (0, 0)),      # b1 column
                pl.BlockSpec((D_H, D_H), lambda i: (0, 0)),    # w2 [128,128]
                pl.BlockSpec((D_H, 1), lambda i: (0, 0)),      # b2 column
                pl.BlockSpec((1, D_H), lambda i: (0, 0)),      # w3 row [1,128]
                pl.BlockSpec((1, 1), lambda i: (0, 0)),        # b3
            ],
            out_specs=pl.BlockSpec((1, block_b), lambda i: (0, i)),  # lane-dense
        ),
        compiler_params=pltpu.CompilerParams(
            dimension_semantics=("parallel",),          # megacore / v7x 2-TC sharding
            vmem_limit_bytes=32 * 1024 * 1024,
        ),
    )(xp, w1c, b1c, w2c, b2c, w3c, b3)

    # .squeeze() of the PyTorch forward + drop padded rows (padded columns of
    # the (1, B_pad) output hold garbage by construction).
    return out[0, :B]


def init_params(key):
    """Deterministic synthetic parameters (shapes from MLP.__init__, torch layout)."""
    k1, k2, k3, k4, k5, k6 = jax.random.split(key, 6)
    w1 = jax.random.normal(k1, (D_H, D_IN), jnp.float32) * 0.02   # dnn1.weight   [128, 64]
    b1 = jax.random.normal(k2, (D_H, 1), jnp.float32) * 0.02      # dnn1.bias     [128, 1]
    w2 = jax.random.normal(k3, (D_H, D_H), jnp.float32) * 0.02    # dnn2.weight   [128, 128]
    b2 = jax.random.normal(k4, (D_H, 1), jnp.float32) * 0.02      # dnn2.bias     [128, 1]
    w3 = jax.random.normal(k5, (1, D_H), jnp.float32) * 0.02      # output.weight [1, 128]
    b3 = jax.random.normal(k6, (1, 1), jnp.float32) * 0.02        # output.bias   [1, 1]
    return w1, b1, w2, b2, w3, b3


def reference_forward(x, w1, b1, w2, b2, w3, b3, *, approximate=False):
    h1 = jax.nn.gelu(x @ w1.T + b1[:, 0], approximate=approximate)
    h2 = jax.nn.gelu(h1 @ w2.T + b2[:, 0], approximate=approximate)
    logits = h2 @ w3.T + b3[0, 0]
    return jax.nn.sigmoid(logits)[:, 0]


if __name__ == "__main__":
    key = jax.random.PRNGKey(0)
    kp, kx = jax.random.split(key)

    params = init_params(kp)

    # X_balanced / x[:, 0, :] stand-in: [batch, hidden=64] CLS-token features.
    # TODO(synk): embedding + transformer stack (external `model`) not translated.
    # TODO(synk): training-time minority-class resampling + focal loss (data-
    #             dependent host-side Python loop over labels) not translated;
    #             inference (is_training=False) path only.
    batch = 200  # not a multiple of the tile -> exercises padding + 2-step grid
    x = jax.random.normal(kx, (batch, D_IN), jnp.float32)

    y_ref_exact = reference_forward(x, *params, approximate=False)
    y_ref_tanh = reference_forward(x, *params, approximate=True)

    # Torch-parity path (f32, erf GELU): must match the exact reference tightly.
    y_exact = jax.block_until_ready(
        mlp_head_forward(x, *params, use_bf16=False, bf16_act=False,
                         approximate_gelu=False))
    assert y_exact.shape == (batch,)
    assert jnp.allclose(y_exact, y_ref_exact, atol=1e-5, rtol=1e-5)

    # Default fast path (bf16 MXU + bf16 tanh-GELU): looser tolerance by construction.
    y_fast = jax.block_until_ready(mlp_head_forward(x, *params))
    assert y_fast.shape == (batch,)
    assert jnp.allclose(y_fast, y_ref_tanh, atol=2e-2, rtol=0)

    print("KERNEL_OK")
</pallas_src>

<mosaic_0001>
module attributes {stable_mosaic.version = 11 : i64} {
  func.func @mlp_head_kernel(%arg0: i32, %arg1: memref<128x64xf32, #tpu.memory_space<vmem>>, %arg2: memref<128x64xf32, #tpu.memory_space<vmem>>, %arg3: memref<128x1xf32, #tpu.memory_space<vmem>>, %arg4: memref<128x128xf32, #tpu.memory_space<vmem>>, %arg5: memref<128x1xf32, #tpu.memory_space<vmem>>, %arg6: memref<1x128xf32, #tpu.memory_space<vmem>>, %arg7: memref<1x1xf32, #tpu.memory_space<vmem>>, %arg8: memref<1x128xf32, #tpu.memory_space<vmem>>) attributes {dimension_semantics = [#tpu.dimension_semantics<parallel>], iteration_bounds = array<i64: 2>, scalar_prefetch = 0 : i64, scratch_operands = 0 : i64, tpu.core_type = #tpu.core_type<tc>, window_params = [{transform_indices = @transform_0, window_bounds = array<i64: 128, 64>}, {pipeline_mode = #tpu.pipeline_mode<synchronous>, transform_indices = @transform_1, window_bounds = array<i64: 128, 64>}, {pipeline_mode = #tpu.pipeline_mode<synchronous>, transform_indices = @transform_2, window_bounds = array<i64: 128, 1>}, {pipeline_mode = #tpu.pipeline_mode<synchronous>, transform_indices = @transform_3, window_bounds = array<i64: 128, 128>}, {pipeline_mode = #tpu.pipeline_mode<synchronous>, transform_indices = @transform_4, window_bounds = array<i64: 128, 1>}, {pipeline_mode = #tpu.pipeline_mode<synchronous>, transform_indices = @transform_5, window_bounds = array<i64: 1, 128>}, {pipeline_mode = #tpu.pipeline_mode<synchronous>, transform_indices = @transform_6, window_bounds = array<i64: 1, 1>}, {transform_indices = @transform_7, window_bounds = array<i64: 1, 128>}]} {
    %c0 = arith.constant 0 : index
    %c0_0 = arith.constant 0 : index
    %0 = vector.load %arg1[%c0, %c0_0] : memref<128x64xf32, #tpu.memory_space<vmem>>, vector<128x64xf32>
    %c0_1 = arith.constant 0 : index
    %c0_2 = arith.constant 0 : index
    %1 = vector.load %arg2[%c0_1, %c0_2] : memref<128x64xf32, #tpu.memory_space<vmem>>, vector<128x64xf32>
    %cst = arith.constant dense<0.000000e+00> : vector<128x128xf32>
    %2 = tpu.matmul %1, %0, %cst {dimension_numbers = #tpu.dot_dimension_numbers<[1], [1], [0], [0], [0, 0, 1, 0], [], []>} : vector<128x64xf32>, vector<128x64xf32>, vector<128x128xf32> -> vector<128x128xf32>
    %c0_3 = arith.constant 0 : index
    %c0_4 = arith.constant 0 : index
    %3 = vector.load %arg3[%c0_3, %c0_4] : memref<128x1xf32, #tpu.memory_space<vmem>>, vector<128x1xf32>
    %4 = vector.broadcast %3 : vector<128x1xf32> to vector<128x128xf32>
    %5 = arith.addf %2, %4 : vector<128x128xf32>
    %cst_5 = arith.constant 5.000000e-01 : f32
    %6 = vector.broadcast %cst_5 : f32 to vector<128x128xf32>
    %7 = arith.mulf %6, %5 : vector<128x128xf32>
    %cst_6 = arith.constant 0.707106769 : f32
    %8 = vector.broadcast %cst_6 : f32 to vector<128x128xf32>
    %9 = arith.mulf %5, %8 : vector<128x128xf32>
    %10 = math.erf %9 : vector<128x128xf32>
    %cst_7 = arith.constant 1.000000e+00 : f32
    %11 = vector.broadcast %cst_7 : f32 to vector<128x128xf32>
    %12 = arith.addf %11, %10 : vector<128x128xf32>
    %13 = arith.mulf %7, %12 : vector<128x128xf32>
    %c0_8 = arith.constant 0 : index
    %c0_9 = arith.constant 0 : index
    %14 = vector.load %arg4[%c0_8, %c0_9] : memref<128x128xf32, #tpu.memory_space<vmem>>, vector<128x128xf32>
    %cst_10 = arith.constant dense<0.000000e+00> : vector<128x128xf32>
    %15 = tpu.matmul %14, %13, %cst_10 {dimension_numbers = #tpu.dot_dimension_numbers<[1], [0], [0], [1], [0, 0, 1, 1], [], []>} : vector<128x128xf32>, vector<128x128xf32>, vector<128x128xf32> -> vector<128x128xf32>
    %c0_11 = arith.constant 0 : index
    %c0_12 = arith.constant 0 : index
    %16 = vector.load %arg5[%c0_11, %c0_12] : memref<128x1xf32, #tpu.memory_space<vmem>>, vector<128x1xf32>
    %17 = vector.broadcast %16 : vector<128x1xf32> to vector<128x128xf32>
    %18 = arith.addf %15, %17 : vector<128x128xf32>
    %cst_13 = arith.constant 5.000000e-01 : f32
    %19 = vector.broadcast %cst_13 : f32 to vector<128x128xf32>
    %20 = arith.mulf %19, %18 : vector<128x128xf32>
    %cst_14 = arith.constant 0.707106769 : f32
    %21 = vector.broadcast %cst_14 : f32 to vector<128x128xf32>
    %22 = arith.mulf %18, %21 : vector<128x128xf32>
    %23 = math.erf %22 : vector<128x128xf32>
    %cst_15 = arith.constant 1.000000e+00 : f32
    %24 = vector.broadcast %cst_15 : f32 to vector<128x128xf32>
    %25 = arith.addf %24, %23 : vector<128x128xf32>
    %26 = arith.mulf %20, %25 : vector<128x128xf32>
    %c0_16 = arith.constant 0 : index
    %c0_17 = arith.constant 0 : index
    %27 = vector.load %arg6[%c0_16, %c0_17] : memref<1x128xf32, #tpu.memory_space<vmem>>, vector<1x128xf32>
    %cst_18 = arith.constant dense<0.000000e+00> : vector<1x128xf32>
    %28 = tpu.matmul %27, %26, %cst_18 {dimension_numbers = #tpu.dot_dimension_numbers<[1], [0], [0], [1], [0, 0, 1, 1], [], []>} : vector<1x128xf32>, vector<128x128xf32>, vector<1x128xf32> -> vector<1x128xf32>
    %c0_19 = arith.constant 0 : index
    %c0_20 = arith.constant 0 : index
    %29 = vector.load %arg7[%c0_19, %c0_20] : memref<1x1xf32, #tpu.memory_space<vmem>>, vector<1x1xf32>
    %30 = vector.broadcast %29 : vector<1x1xf32> to vector<1x128xf32>
    %31 = arith.addf %28, %30 : vector<1x128xf32>
    %32 = arith.negf %31 : vector<1x128xf32>
    %33 = math.exp %32 : vector<1x128xf32>
    %cst_21 = arith.constant 1.000000e+00 : f32
    %34 = vector.broadcast %cst_21 : f32 to vector<1x128xf32>
    %35 = arith.addf %34, %33 : vector<1x128xf32>
    %36 = arith.divf %34, %35 : vector<1x128xf32>
    %c0_22 = arith.constant 0 : index
    %c0_23 = arith.constant 0 : index
    %37 = vector.load %arg8[%c0_22, %c0_23] : memref<1x128xf32, #tpu.memory_space<vmem>>, vector<1x128xf32>
    tpu.vector_store %arg8[%c0_22, %c0_23], %36 {strides = array<i32>} : memref<1x128xf32, #tpu.memory_space<vmem>>, vector<1x128xf32>,
    return
  }
  func.func @transform_0(%arg0: i32) -> (i32, i32) {
    %c0_i32 = arith.constant 0 : i32
    %c0_i32_0 = arith.constant 0 : i32
    return %arg0, %c0_i32 : i32, i32
  }
  func.func @transform_1(%arg0: i32) -> (i32, i32) {
    %c0_i32 = arith.constant 0 : i32
    %c0_i32_0 = arith.constant 0 : i32
    %c0_i32_1 = arith.constant 0 : i32
    return %c0_i32, %c0_i32_0 : i32, i32
  }
  func.func @transform_2(%arg0: i32) -> (i32, i32) {
    %c0_i32 = arith.constant 0 : i32
    %c0_i32_0 = arith.constant 0 : i32
    %c0_i32_1 = arith.constant 0 : i32
    return %c0_i32, %c0_i32_0 : i32, i32
  }
  func.func @transform_3(%arg0: i32) -> (i32, i32) {
    %c0_i32 = arith.constant 0 : i32
    %c0_i32_0 = arith.constant 0 : i32
    %c0_i32_1 = arith.constant 0 : i32
    return %c0_i32, %c0_i32_0 : i32, i32
  }
  func.func @transform_4(%arg0: i32) -> (i32, i32) {
    %c0_i32 = arith.constant 0 : i32
    %c0_i32_0 = arith.constant 0 : i32
    %c0_i32_1 = arith.constant 0 : i32
    return %c0_i32, %c0_i32_0 : i32, i32
  }
  func.func @transform_5(%arg0: i32) -> (i32, i32) {
    %c0_i32 = arith.constant 0 : i32
    %c0_i32_0 = arith.constant 0 : i32
    %c0_i32_1 = arith.constant 0 : i32
    return %c0_i32, %c0_i32_0 : i32, i32
  }
  func.func @transform_6(%arg0: i32) -> (i32, i32) {
    %c0_i32 = arith.constant 0 : i32
    %c0_i32_0 = arith.constant 0 : i32
    %c0_i32_1 = arith.constant 0 : i32
    return %c0_i32, %c0_i32_0 : i32, i32
  }
  func.func @transform_7(%arg0: i32) -> (i32, i32) {
    %c0_i32 = arith.constant 0 : i32
    %c0_i32_0 = arith.constant 0 : i32
    return %c0_i32, %arg0 : i32, i32
  }
}

</mosaic_0001>

<llo_original>
// kernel: mlp_head_forward.1
$region0: #{mlp_head_forward.1}
  #allocation0 [shape = 'u32[]', space=smem, size = 0x4, offset = 0x4, fixed_abs, tag = 'smem constant byte address 0x4 - core index']
  #allocation1 [shape = 'u32[144,128]{1,0:T(1,128)}', space=vmem, size = 0x12000, scoped, tag = 'internal scratch']
  #allocation2 [shape = 'f32[1,1]{1,0:T(1,128)S(1)}', space=vmem, size = 0x200, scoped, tag = 'scoped memory for mlp_head_forward.1']
  %s0 = inlined_call_operand.vmem [shape: f32[256,64], index: 0, kind: input, shape index: {}]
  %s1 = inlined_call_operand.vmem [shape: f32[128,64], index: 1, kind: input, shape index: {}]
  %s2 = inlined_call_operand.vmem [shape: f32[128,1], index: 2, kind: input, shape index: {}]
  %s3 = inlined_call_operand.vmem [shape: f32[128,128], index: 3, kind: input, shape index: {}]
  %s4 = inlined_call_operand.vmem [shape: f32[128,1], index: 4, kind: input, shape index: {}]
  %s5 = inlined_call_operand.vmem [shape: f32[1,128], index: 5, kind: input, shape index: {}]
  %s6 = inlined_call_operand.<no memory space> [shape: f32[1,1], index: 6, kind: input, shape index: {}]
  %s7 = inlined_call_operand.hbm [shape: f32[1,256], index: 7, kind: output, shape index: {}]
  %s8 = sld [smem:[#allocation0]]
  $region61: #{mlp_head_forward.1} parent=0
    _
  %s10 = ssub.s32 1, %s8
  %s11 = scalar_select 0, %s10, %s8
  %v12 = vstv %s6
  %13 = vst [vmem:[#allocation2] sm:$0x1] %v12
  $region1: #{mlp_head_forward.1} parent=0
    #allocation3 [shape = 'u8[1024]{0}', space=vmem, size = 0x400, scoped, tag = 'output window, operand 0']
    #allocation4 [shape = 's32[2]{0}', space=sflag, size = 0x8, scoped, tag = 'scoped memory for mlp_head_forward.1']
    %14 = vsyncpa [#allocation4], 0
    %s15 = scalar_lea.sflag [#allocation4], 1
    %16 = vsyncpa %s15, 0
    loop: start=0, step=1, limit=4
    $region2: #{mlp_head_forward.1} parent=1 // loop_pre_header
      _
    $region3: #{mlp_head_forward.1} parent=1 // loop_header
      %s18 = sphi 0, %s22
      %p19 = scmp.ge.s32.totalorder %s18, 4
      %s28 = sphi 0, %s30
      %s31 = sphi 0, %s28
      %s32 = sphi 0, %s31
      %s48 = sphi 0, %s32
      %s52 = sphi 0, %s52
      %s54 = sphi 0, %s52
      %s55 = sphi 0, %s54
      %s69 = sphi 0, %s55
      %s73 = sphi 0, %s73
      %s75 = sphi 0, %s73
      %s76 = sphi 0, %s75
      %s90 = sphi 0, %s76
      %s94 = sphi 0, %s94
      %s96 = sphi 0, %s94
      %s97 = sphi 0, %s96
      %s111 = sphi 0, %s97
      %s115 = sphi 0, %s115
      %s117 = sphi 0, %s115
      %s118 = sphi 0, %s117
      %s132 = sphi 0, %s118
      %s136 = sphi 0, %s136
      %s138 = sphi 0, %s136
      %s139 = sphi 0, %s138
      %s153 = sphi 0, %s139
      %s157 = sphi 0, %s157
      %s159 = sphi 0, %s157
      %s160 = sphi 0, %s159
      %s174 = sphi 0, %s160
      %s180 = sphi 0, %s182
      %s183 = sphi 0, %s180
      %s184 = sphi 0, %s183
      %s200 = sphi 0, %s184
    $region4: #{mlp_head_forward.1} parent=1 // loop_header_branch
      %21 = sbr.rel (%p19) target = $region8
    $region5: #{mlp_head_forward.1} parent=1 // loop_body
      %s23 = ssub.s32 %s18, 1
      %s24 = ssub.s32 %s18, 2
      %s25 = sadd.s32 %s18, 1
      %s26 = ssub.s32 %s18, %s25
      %p27 = scmp.eq.s32.totalorder %s26, 0
      %s29 = sadd.s32 %s28, 1
      %s30 = scalar_select %p27, %s28, %s29
      %p33 = pneg %p27
      %p34 = scmp.eq.s32.totalorder %s18, 1
      %p35 = por %p33, %p34
      %p36 = scmp.ne.s32.totalorder %s28, %s31
      %p37 = scmp.eq.s32.totalorder %s18, 0
      %p38 = por %p36, %p37
      %p39 = scmp.ne.s32.totalorder %s28, %s31
      %p40 = scmp.eq.s32.totalorder %s23, 1
      %p41 = por %p39, %p40
      %p42 = scmp.ne.s32.totalorder %s31, %s32
      %p43 = scmp.eq.s32.totalorder %s23, 0
      %p44 = por %p42, %p43
      %p45 = scmp.ne.s32.totalorder %s31, %s32
      %p46 = scmp.eq.s32.totalorder %s24, 1
      %p47 = por %p45, %p46
      %p49 = scmp.ne.s32.totalorder %s32, %s48
      %p50 = scmp.eq.s32.totalorder %s24, 0
      %p51 = por %p49, %p50
      %s53 = sadd.s32 %s52, 1
      %p56 = scmp.eq.s32.totalorder %s18, 1
      %p57 = scmp.ne.s32.totalorder %s52, %s54
      %p58 = scmp.eq.s32.totalorder %s18, 0
      %p59 = por %p57, %p58
      %p60 = scmp.ne.s32.totalorder %s52, %s54
      %p61 = scmp.eq.s32.totalorder %s23, 1
      %p62 = por %p60, %p61
      %p63 = scmp.ne.s32.totalorder %s54, %s55
      %p64 = scmp.eq.s32.totalorder %s23, 0
      %p65 = por %p63, %p64
      %p66 = scmp.ne.s32.totalorder %s54, %s55
      %p67 = scmp.eq.s32.totalorder %s24, 1
      %p68 = por %p66, %p67
      %p70 = scmp.ne.s32.totalorder %s55, %s69
      %p71 = scmp.eq.s32.totalorder %s24, 0
      %p72 = por %p70, %p71
      %s74 = sadd.s32 %s73, 1
      %p77 = scmp.eq.s32.totalorder %s18, 1
      %p78 = scmp.ne.s32.totalorder %s73, %s75
      %p79 = scmp.eq.s32.totalorder %s18, 0
      %p80 = por %p78, %p79
      %p81 = scmp.ne.s32.totalorder %s73, %s75
      %p82 = scmp.eq.s32.totalorder %s23, 1
      %p83 = por %p81, %p82
      %p84 = scmp.ne.s32.totalorder %s75, %s76
      %p85 = scmp.eq.s32.totalorder %s23, 0
      %p86 = por %p84, %p85
      %p87 = scmp.ne.s32.totalorder %s75, %s76
      %p88 = scmp.eq.s32.totalorder %s24, 1
      %p89 = por %p87, %p88
      %p91 = scmp.ne.s32.totalorder %s76, %s90
      %p92 = scmp.eq.s32.totalorder %s24, 0
      %p93 = por %p91, %p92
      %s95 = sadd.s32 %s94, 1
      %p98 = scmp.eq.s32.totalorder %s18, 1
      %p99 = scmp.ne.s32.totalorder %s94, %s96
      %p100 = scmp.eq.s32.totalorder %s18, 0
      %p101 = por %p99, %p100
      %p102 = scmp.ne.s32.totalorder %s94, %s96
      %p103 = scmp.eq.s32.totalorder %s23, 1
      %p104 = por %p102, %p103
      %p105 = scmp.ne.s32.totalorder %s96, %s97
      %p106 = scmp.eq.s32.totalorder %s23, 0
      %p107 = por %p105, %p106
      %p108 = scmp.ne.s32.totalorder %s96, %s97
      %p109 = scmp.eq.s32.totalorder %s24, 1
      %p110 = por %p108, %p109
      %p112 = scmp.ne.s32.totalorder %s97, %s111
      %p113 = scmp.eq.s32.totalorder %s24, 0
      %p114 = por %p112, %p113
      %s116 = sadd.s32 %s115, 1
      %p119 = scmp.eq.s32.totalorder %s18, 1
      %p120 = scmp.ne.s32.totalorder %s115, %s117
      %p121 = scmp.eq.s32.totalorder %s18, 0
      %p122 = por %p120, %p121
      %p123 = scmp.ne.s32.totalorder %s115, %s117
      %p124 = scmp.eq.s32.totalorder %s23, 1
      %p125 = por %p123, %p124
      %p126 = scmp.ne.s32.totalorder %s117, %s118
      %p127 = scmp.eq.s32.totalorder %s23, 0
      %p128 = por %p126, %p127
      %p129 = scmp.ne.s32.totalorder %s117, %s118
      %p130 = scmp.eq.s32.totalorder %s24, 1
      %p131 = por %p129, %p130
      %p133 = scmp.ne.s32.totalorder %s118, %s132
      %p134 = scmp.eq.s32.totalorder %s24, 0
      %p135 = por %p133, %p134
      %s137 = sadd.s32 %s136, 1
      %p140 = scmp.eq.s32.totalorder %s18, 1
      %p141 = scmp.ne.s32.totalorder %s136, %s138
      %p142 = scmp.eq.s32.totalorder %s18, 0
      %p143 = por %p141, %p142
      %p144 = scmp.ne.s32.totalorder %s136, %s138
      %p145 = scmp.eq.s32.totalorder %s23, 1
      %p146 = por %p144, %p145
      %p147 = scmp.ne.s32.totalorder %s138, %s139
      %p148 = scmp.eq.s32.totalorder %s23, 0
      %p149 = por %p147, %p148
      %p150 = scmp.ne.s32.totalorder %s138, %s139
      %p151 = scmp.eq.s32.totalorder %s24, 1
      %p152 = por %p150, %p151
      %p154 = scmp.ne.s32.totalorder %s139, %s153
      %p155 = scmp.eq.s32.totalorder %s24, 0
      %p156 = por %p154, %p155
      %s158 = sadd.s32 %s157, 1
      %p161 = scmp.eq.s32.totalorder %s18, 1
      %p162 = scmp.ne.s32.totalorder %s157, %s159
      %p163 = scmp.eq.s32.totalorder %s18, 0
      %p164 = por %p162, %p163
      %p165 = scmp.ne.s32.totalorder %s157, %s159
      %p166 = scmp.eq.s32.totalorder %s23, 1
      %p167 = por %p165, %p166
      %p168 = scmp.ne.s32.totalorder %s159, %s160
      %p169 = scmp.eq.s32.totalorder %s23, 0
      %p170 = por %p168, %p169
      %p171 = scmp.ne.s32.totalorder %s159, %s160
      %p172 = scmp.eq.s32.totalorder %s24, 1
      %p173 = por %p171, %p172
      %p175 = scmp.ne.s32.totalorder %s160, %s174
      %p176 = scmp.eq.s32.totalorder %s24, 0
      %p177 = por %p175, %p176
      %s178 = ssub.s32 %s18, %s25
      %p179 = scmp.eq.s32.totalorder %s178, 0
      %s181 = sadd.s32 %s180, 1
      %s182 = scalar_select %p179, %s180, %s181
      %p185 = pneg %p179
      %p186 = scmp.eq.s32.totalorder %s18, 1
      %p187 = por %p185, %p186
      %p188 = scmp.ne.s32.totalorder %s180, %s183
      %p189 = scmp.eq.s32.totalorder %s18, 0
      %p190 = por %p188, %p189
      %p191 = scmp.ne.s32.totalorder %s180, %s183
      %p192 = scmp.eq.s32.totalorder %s23, 1
      %p193 = por %p191, %p192
      %p194 = scmp.ne.s32.totalorder %s183, %s184
      %p195 = scmp.eq.s32.totalorder %s23, 0
      %p196 = por %p194, %p195
      %p197 = scmp.ne.s32.totalorder %s183, %s184
      %p198 = scmp.eq.s32.totalorder %s24, 1
      %p199 = por %p197, %p198
      %p201 = scmp.ne.s32.totalorder %s184, %s200
      %p202 = scmp.eq.s32.totalorder %s24, 0
      %p203 = por %p201, %p202
      %p204 = scmp.le.s32.totalorder 1, %s18
      %p205 = scmp.lt.s32.totalorder %s18, 3
      %p206 = pnand %p204, %p205
      %p207 = pneg %p206
      // Predicated region
      $region9: #{mlp_head_forward.1} parent=5 // pred_check
        _
      $region10: #{mlp_head_forward.1} parent=5 // pred_check_branch
        %209 = sbr.rel (%p206) target = $region12
      $region11: #{mlp_head_forward.1} parent=5 // pred_region
        %s210 = ssub.s32 %s18, 1
        // Predicated region
        $region13: #{mlp_head_forward.1} parent=11 // pred_check
          %p211 = pneg %p65
        $region14: #{mlp_head_forward.1} parent=11 // pred_check_branch
          %213 = sbr.rel (%p211) target = $region16
        $region15: #{mlp_head_forward.1} parent=11 // pred_region
          _
        $region16: #{mlp_head_forward.1} parent=11 // pred_fallthru
          _
        // Predicated region
        $region17: #{mlp_head_forward.1} parent=11 // pred_check
          %p214 = pneg %p86
        $region18: #{mlp_head_forward.1} parent=11 // pred_check_branch
          %216 = sbr.rel (%p214) target = $region20
        $region19: #{mlp_head_forward.1} parent=11 // pred_region
          _
        $region20: #{mlp_head_forward.1} parent=11 // pred_fallthru
          _
        // Predicated region
        $region21: #{mlp_head_forward.1} parent=11 // pred_check
          %p217 = pneg %p107
        $region22: #{mlp_head_forward.1} parent=11 // pred_check_branch
          %219 = sbr.rel (%p217) target = $region24
        $region23: #{mlp_head_forward.1} parent=11 // pred_region
          _
        $region24: #{mlp_head_forward.1} parent=11 // pred_fallthru
          _
        // Predicated region
        $region25: #{mlp_head_forward.1} parent=11 // pred_check
          %p220 = pneg %p128
        $region26: #{mlp_head_forward.1} parent=11 // pred_check_branch
          %222 = sbr.rel (%p220) target = $region28
        $region27: #{mlp_head_forward.1} parent=11 // pred_region
          _
        $region28: #{mlp_head_forward.1} parent=11 // pred_fallthru
          _
        // Predicated region
        $region29: #{mlp_head_forward.1} parent=11 // pred_check
          %p223 = pneg %p149
        $region30: #{mlp_head_forward.1} parent=11 // pred_check_branch
          %225 = sbr.rel (%p223) target = $region32
        $region31: #{mlp_head_forward.1} parent=11 // pred_region
          _
        $region32: #{mlp_head_forward.1} parent=11 // pred_fallthru
          _
        // Predicated region
        $region33: #{mlp_head_forward.1} parent=11 // pred_check
          %p226 = pneg %p170
        $region34: #{mlp_head_forward.1} parent=11 // pred_check_branch
          %228 = sbr.rel (%p226) target = $region36
        $region35: #{mlp_head_forward.1} parent=11 // pred_region
          _
        $region36: #{mlp_head_forward.1} parent=11 // pred_fallthru
          _
      $region12: #{mlp_head_forward.1} parent=5 // pred_fallthru
        _
      %p229 = scmp.lt.s32.totalorder %s18, 2
      // Predicated region
      $region37: #{mlp_head_forward.1} parent=5 // pred_check
        %p230 = pneg %p229
      $region38: #{mlp_head_forward.1} parent=5 // pred_check_branch
        %232 = sbr.rel (%p230) target = $region40
      $region39: #{mlp_head_forward.1} parent=5 // pred_region
        // Predicated region
        $region41: #{mlp_head_forward.1} parent=39 // pred_check
          %p233 = pneg %p38
        $region42: #{mlp_head_forward.1} parent=39 // pred_check_branch
          %235 = sbr.rel (%p233) target = $region44
        $region43: #{mlp_head_forward.1} parent=39 // pred_region
          %s236 = smul.u32 16, %s18
          %p237 = scmp.lt.s32.totalorder %s236, 31
          %s238 = scalar_select %p237, %s236, 31
          %s239 = smul.addr %s238, 8
          %s240 = scalar_lea.vmem %s0, %s239
          %s241 = smul.u32 16, %s18
        $region44: #{mlp_head_forward.1} parent=39 // pred_fallthru
          _
      $region40: #{mlp_head_forward.1} parent=5 // pred_fallthru
        _
      %p242 = scmp.le.s32.totalorder 1, %s18
      %p243 = scmp.lt.s32.totalorder %s18, 3
      %p244 = pnand %p242, %p243
      %p245 = pneg %p244
      // Predicated region
      $region45: #{mlp_head_forward.1} parent=5 // pred_check
        _
      $region46: #{mlp_head_forward.1} parent=5 // pred_check_branch
        %247 = sbr.rel (%p244) target = $region48
      $region47: #{mlp_head_forward.1} parent=5 // pred_region
        %s248 = ssub.s32 %s18, 1
        %s249 = smul.u32 16, %s23
        %p250 = scmp.lt.s32.totalorder %s249, 31
        %s251 = scalar_select %p250, %s249, 31
        %s252 = smul.addr %s251, 8
        %s253 = scalar_lea.vmem %s0, %s252
        %p254 = pneg %p44
        %p255 = pneg %p41
        %p256 = pneg %p65
        %p257 = pneg %p62
        %p258 = pneg %p86
        %p259 = pneg %p83
        %p260 = pneg %p107
        %p261 = pneg %p104
        %p262 = pneg %p128
        %p263 = pneg %p125
        %p264 = pneg %p149
        %p265 = pneg %p146
        %p266 = pneg %p170
        %p267 = pneg %p167
        %p268 = pneg %p196
        %p269 = pneg %p193
        %s270 = sand.u32 %s183, 1
        %s271 = scalar_lea.sflag [#allocation4], %s270
        %s272 = sand.u32 %s183, 1
        %s273 = scalar_lea.vmem [#allocation3], %s272
        %s274 = smul.u32 16, %s23
        %p275 = scmp.lt.s32.totalorder %s274, 31
        %s276 = scalar_select %p275, %s274, 31
        %s277 = smul.addr %s276, 8
        %s278 = scalar_lea.vmem %s0, %s277
        %s279 = smul.u32 16, %s23
        %v280 = vld [vmem:[%s278] sm:$0xff]
        %v281 = vld [vmem:[%s278 + $0x8] sm:$0xff]
        %v282 = vld [vmem:[%s278 + $0x10] sm:$0xff]
        %v283 = vld [vmem:[%s278 + $0x18] sm:$0xff]
        %v284 = vld [vmem:[%s278 + $0x20] sm:$0xff]
        %v285 = vld [vmem:[%s278 + $0x28] sm:$0xff]
        %v286 = vld [vmem:[%s278 + $0x30] sm:$0xff]
        %v287 = vld [vmem:[%s278 + $0x38] sm:$0xff]
        %v288 = vld [vmem:[%s278 + $0x40] sm:$0xff]
        %v289 = vld [vmem:[%s278 + $0x48] sm:$0xff]
        %v290 = vld [vmem:[%s278 + $0x50] sm:$0xff]
        %v291 = vld [vmem:[%s278 + $0x58] sm:$0xff]
        %v292 = vld [vmem:[%s278 + $0x60] sm:$0xff]
        %v293 = vld [vmem:[%s278 + $0x68] sm:$0xff]
        %v294 = vld [vmem:[%s278 + $0x70] sm:$0xff]
        %v295 = vld [vmem:[%s278 + $0x78] sm:$0xff]
        %v296 = vld [vmem:[%s1] sm:$0xff]
        %v297 = vld [vmem:[%s1 + $0x8] sm:$0xff]
        %v298 = vld [vmem:[%s1 + $0x10] sm:$0xff]
        %v299 = vld [vmem:[%s1 + $0x18] sm:$0xff]
        %v300 = vld [vmem:[%s1 + $0x20] sm:$0xff]
        %v301 = vld [vmem:[%s1 + $0x28] sm:$0xff]
        %v302 = vld [vmem:[%s1 + $0x30] sm:$0xff]
        %v303 = vld [vmem:[%s1 + $0x38] sm:$0xff]
        %v304 = vld [vmem:[%s1 + $0x40] sm:$0xff]
        %v305 = vld [vmem:[%s1 + $0x48] sm:$0xff]
        %v306 = vld [vmem:[%s1 + $0x50] sm:$0xff]
        %v307 = vld [vmem:[%s1 + $0x58] sm:$0xff]
        %v308 = vld [vmem:[%s1 + $0x60] sm:$0xff]
        %v309 = vld [vmem:[%s1 + $0x68] sm:$0xff]
        %v310 = vld [vmem:[%s1 + $0x70] sm:$0xff]
        %v311 = vld [vmem:[%s1 + $0x78] sm:$0xff]
        %v312 = vld [vmem:[%s2] sm:$0xff]
        %v313 = vld [vmem:[%s2 + $0x8] sm:$0xff]
        %v314 = vld [vmem:[%s2 + $0x10] sm:$0xff]
        %v315 = vld [vmem:[%s2 + $0x18] sm:$0xff]
        %v316 = vld [vmem:[%s2 + $0x20] sm:$0xff]
        %v317 = vld [vmem:[%s2 + $0x28] sm:$0xff]
        %v318 = vld [vmem:[%s2 + $0x30] sm:$0xff]
        %v319 = vld [vmem:[%s2 + $0x38] sm:$0xff]
        %v320 = vld [vmem:[%s2 + $0x40] sm:$0xff]
        %v321 = vld [vmem:[%s2 + $0x48] sm:$0xff]
        %v322 = vld [vmem:[%s2 + $0x50] sm:$0xff]
        %v323 = vld [vmem:[%s2 + $0x58] sm:$0xff]
        %v324 = vld [vmem:[%s2 + $0x60] sm:$0xff]
        %v325 = vld [vmem:[%s2 + $0x68] sm:$0xff]
        %v326 = vld [vmem:[%s2 + $0x70] sm:$0xff]
        %v327 = vld [vmem:[%s2 + $0x78] sm:$0xff]
        %329 = vset.pattern.permute.xlu0 0
        %330 = vperm.xlu0 %329, %v312
        %v331 = vpop.permute.xlu0 %330
        %334 = vset.pattern.permute.xlu0 0
        %335 = vperm.xlu0 %334, %v313
        %v336 = vpop.permute.xlu0 %335
        %339 = vset.pattern.permute.xlu0 0
        %340 = vperm.xlu0 %339, %v314
        %v341 = vpop.permute.xlu0 %340
        %344 = vset.pattern.permute.xlu0 0
        %345 = vperm.xlu0 %344, %v315
        %v346 = vpop.permute.xlu0 %345
        %349 = vset.pattern.permute.xlu0 0
        %350 = vperm.xlu0 %349, %v316
        %v351 = vpop.permute.xlu0 %350
        %354 = vset.pattern.permute.xlu0 0
        %355 = vperm.xlu0 %354, %v317
        %v356 = vpop.permute.xlu0 %355
        %359 = vset.pattern.permute.xlu0 0
        %360 = vperm.xlu0 %359, %v318
        %v361 = vpop.permute.xlu0 %360
        %364 = vset.pattern.permute.xlu0 0
        %365 = vperm.xlu0 %364, %v319
        %v366 = vpop.permute.xlu0 %365
        %369 = vset.pattern.permute.xlu0 0
        %370 = vperm.xlu0 %369, %v320
        %v371 = vpop.permute.xlu0 %370
        %374 = vset.pattern.permute.xlu0 0
        %375 = vperm.xlu0 %374, %v321
        %v376 = vpop.permute.xlu0 %375
        %379 = vset.pattern.permute.xlu0 0
        %380 = vperm.xlu0 %379, %v322
        %v381 = vpop.permute.xlu0 %380
        %384 = vset.pattern.permute.xlu0 0
        %385 = vperm.xlu0 %384, %v323
        %v386 = vpop.permute.xlu0 %385
        %389 = vset.pattern.permute.xlu0 0
        %390 = vperm.xlu0 %389, %v324
        %v391 = vpop.permute.xlu0 %390
        %394 = vset.pattern.permute.xlu0 0
        %395 = vperm.xlu0 %394, %v325
        %v396 = vpop.permute.xlu0 %395
        %399 = vset.pattern.permute.xlu0 0
        %400 = vperm.xlu0 %399, %v326
        %v401 = vpop.permute.xlu0 %400
        %404 = vset.pattern.permute.xlu0 0
        %405 = vperm.xlu0 %404, %v327
        %v406 = vpop.permute.xlu0 %405
        %vm408 = vcmask 523264
        %v410 = vsel %vm408, %v296, 0
        %v413 = vsel %vm408, %v297, 0
        %v416 = vsel %vm408, %v298, 0
        %v419 = vsel %vm408, %v299, 0
        %v422 = vsel %vm408, %v300, 0
        %v425 = vsel %vm408, %v301, 0
        %v428 = vsel %vm408, %v302, 0
        %v431 = vsel %vm408, %v303, 0
        %v434 = vsel %vm408, %v304, 0
        %v437 = vsel %vm408, %v305, 0
        %v440 = vsel %vm408, %v306, 0
        %v443 = vsel %vm408, %v307, 0
        %v446 = vsel %vm408, %v308, 0
        %v449 = vsel %vm408, %v309, 0
        %v452 = vsel %vm408, %v310, 0
        %v455 = vsel %vm408, %v311, 0
        %v458 = vsel %vm408, %v280, 0
        %v461 = vsel %vm408, %v281, 0
        %v464 = vsel %vm408, %v282, 0
        %v467 = vsel %vm408, %v283, 0
        %v470 = vsel %vm408, %v284, 0
        %v473 = vsel %vm408, %v285, 0
        %v476 = vsel %vm408, %v286, 0
        %v479 = vsel %vm408, %v287, 0
        %v482 = vsel %vm408, %v288, 0
        %v485 = vsel %vm408, %v289, 0
        %v488 = vsel %vm408, %v290, 0
        %v491 = vsel %vm408, %v291, 0
        %v494 = vsel %vm408, %v292, 0
        %v497 = vsel %vm408, %v293, 0
        %v500 = vsel %vm408, %v294, 0
        %v503 = vsel %vm408, %v295, 0
        %505 = vmatprep.subr.mxu0 0.0
        %506 = vmatpush1.xpose.msra.mxu0 %v458
        %507 = vmatprep.subr.mxu0 0.0
        %508 = vmatpush1.xpose.msra.mxu0 %v461
        %509 = vmatprep.subr.mxu0 0.0
        %510 = vmatpush1.xpose.msra.mxu0 %v464
        %511 = vmatprep.subr.mxu0 0.0
        %512 = vmatpush1.xpose.msra.mxu0 %v467
        %513 = vmatprep.subr.mxu0 0.0
        %514 = vmatpush1.xpose.msra.mxu0 %v470
        %515 = vmatprep.subr.mxu0 0.0
        %516 = vmatpush1.xpose.msra.mxu0 %v473
        %517 = vmatprep.subr.mxu0 0.0
        %518 = vmatpush1.xpose.msra.mxu0 %v476
        %519 = vmatprep.subr.mxu0 0.0
        %520 = vmatpush1.xpose.msra.mxu0 %v479
        %521 = vmatprep.subr.mxu0 0.0
        %522 = vmatpush1.xpose.msra.mxu0 %v482
        %523 = vmatprep.subr.mxu0 0.0
        %524 = vmatpush1.xpose.msra.mxu0 %v485
        %525 = vmatprep.subr.mxu0 0.0
        %526 = vmatpush1.xpose.msra.mxu0 %v488
        %527 = vmatprep.subr.mxu0 0.0
        %528 = vmatpush1.xpose.msra.mxu0 %v491
        %529 = vmatprep.subr.mxu0 0.0
        %530 = vmatpush1.xpose.msra.mxu0 %v494
        %531 = vmatprep.subr.mxu0 0.0
        %532 = vmatpush1.xpose.msra.mxu0 %v497
        %533 = vmatprep.subr.mxu0 0.0
        %534 = vmatpush1.xpose.msra.mxu0 %v500
        %535 = vmatprep.subr.mxu0 0.0
        %536 = vmatpush1.xpose.msra.mxu0 %v503
        %537 = vmatprep.subr.mxu0 0.0
        %538 = vmatpush1.xpose.msra.mxu0 0.0
        %539 = vmatprep.subr.mxu0 0.0
        %540 = vmatpush1.xpose.msra.mxu0 0.0
        %541 = vmatprep.subr.mxu0 0.0
        %542 = vmatpush1.xpose.msra.mxu0 0.0
        %543 = vmatprep.subr.mxu0 0.0
        %544 = vmatpush1.xpose.msra.mxu0 0.0
        %545 = vmatprep.subr.mxu0 0.0
        %546 = vmatpush1.xpose.msra.mxu0 0.0
        %547 = vmatprep.subr.mxu0 0.0
        %548 = vmatpush1.xpose.msra.mxu0 0.0
        %549 = vmatprep.subr.mxu0 0.0
        %550 = vmatpush1.xpose.msra.mxu0 0.0
        %551 = vmatprep.subr.mxu0 0.0
        %552 = vmatpush1.xpose.msra.mxu0 0.0
        %553 = vmatprep.subr.mxu0 0.0
        %554 = vmatpush1.xpose.msra.mxu0 0.0
        %555 = vmatprep.subr.mxu0 0.0
        %556 = vmatpush1.xpose.msra.mxu0 0.0
        %557 = vmatprep.subr.mxu0 0.0
        %558 = vmatpush1.xpose.msra.mxu0 0.0
        %559 = vmatprep.subr.mxu0 0.0
        %560 = vmatpush1.xpose.msra.mxu0 0.0
        %561 = vmatprep.subr.mxu0 0.0
        %562 = vmatpush1.xpose.msra.mxu0 0.0
        %563 = vmatprep.subr.mxu0 0.0
        %564 = vmatpush1.xpose.msra.mxu0 0.0
        %565 = vmatprep.subr.mxu0 0.0
        %566 = vmatpush1.xpose.msra.mxu0 0.0
        %567 = vmatprep.subr.mxu0 0.0
        %568 = vmatpush1.xpose.msra.mxu0 0.0
        %569 = vmatprep.mubr.f32.mxu0 0.0
        %570 = vmatmul.mubr.f32.gmra.mrb[0].mxu0 %v410
        %v571 = vpop.f32.mrb[0].mxu0
        %v572 = vadd.f32 %v331, %v571
        %v573 = vpop.f32.mrb[0].mxu0
        %574 = vmatprep.mubr.f32.mxu0 0.0
        %575 = vmatmul.mubr.f32.gmra.mrb[0].mxu0 %v413
        %v576 = vpop.f32.mrb[0].mxu0
        %v577 = vadd.f32 %v336, %v576
        %v578 = vpop.f32.mrb[0].mxu0
        %579 = vmatprep.mubr.f32.mxu0 0.0
        %580 = vmatmul.mubr.f32.gmra.mrb[0].mxu0 %v416
        %v581 = vpop.f32.mrb[0].mxu0
        %v582 = vadd.f32 %v341, %v581
        %v583 = vpop.f32.mrb[0].mxu0
        %584 = vmatprep.mubr.f32.mxu0 0.0
        %585 = vmatmul.mubr.f32.gmra.mrb[0].mxu0 %v419
        %v586 = vpop.f32.mrb[0].mxu0
        %v587 = vadd.f32 %v346, %v586
        %v588 = vpop.f32.mrb[0].mxu0
        %589 = vmatprep.mubr.f32.mxu0 0.0
        %590 = vmatmul.mubr.f32.gmra.mrb[0].mxu0 %v422
        %v591 = vpop.f32.mrb[0].mxu0
        %v592 = vadd.f32 %v351, %v591
        %v593 = vpop.f32.mrb[0].mxu0
        %594 = vmatprep.mubr.f32.mxu0 0.0
        %595 = vmatmul.mubr.f32.gmra.mrb[0].mxu0 %v425
        %v596 = vpop.f32.mrb[0].mxu0
        %v597 = vadd.f32 %v356, %v596
        %v598 = vpop.f32.mrb[0].mxu0
        %599 = vmatprep.mubr.f32.mxu0 0.0
        %600 = vmatmul.mubr.f32.gmra.mrb[0].mxu0 %v428
        %v601 = vpop.f32.mrb[0].mxu0
        %v602 = vadd.f32 %v361, %v601
        %v603 = vpop.f32.mrb[0].mxu0
        %604 = vmatprep.mubr.f32.mxu0 0.0
        %605 = vmatmul.mubr.f32.gmra.mrb[0].mxu0 %v431
        %v606 = vpop.f32.mrb[0].mxu0
        %v607 = vadd.f32 %v366, %v606
        %v608 = vpop.f32.mrb[0].mxu0
        %609 = vmatprep.mubr.f32.mxu0 0.0
        %610 = vmatmul.mubr.f32.gmra.mrb[0].mxu0 %v434
        %v611 = vpop.f32.mrb[0].mxu0
        %v612 = vadd.f32 %v371, %v611
        %v613 = vpop.f32.mrb[0].mxu0
        %614 = vmatprep.mubr.f32.mxu0 0.0
        %615 = vmatmul.mubr.f32.gmra.mrb[0].mxu0 %v437
        %v616 = vpop.f32.mrb[0].mxu0
        %v617 = vadd.f32 %v376, %v616
        %v618 = vpop.f32.mrb[0].mxu0
        %619 = vmatprep.mubr.f32.mxu0 0.0
        %620 = vmatmul.mubr.f32.gmra.mrb[0].mxu0 %v440
        %v621 = vpop.f32.mrb[0].mxu0
        %v622 = vadd.f32 %v381, %v621
        %v623 = vpop.f32.mrb[0].mxu0
        %624 = vmatprep.mubr.f32.mxu0 0.0
        %625 = vmatmul.mubr.f32.gmra.mrb[0].mxu0 %v443
        %v626 = vpop.f32.mrb[0].mxu0
        %v627 = vadd.f32 %v386, %v626
        %v628 = vpop.f32.mrb[0].mxu0
        %629 = vmatprep.mubr.f32.mxu0 0.0
        %630 = vmatmul.mubr.f32.gmra.mrb[0].mxu0 %v446
        %v631 = vpop.f32.mrb[0].mxu0
        %v632 = vadd.f32 %v391, %v631
        %v633 = vpop.f32.mrb[0].mxu0
        %634 = vmatprep.mubr.f32.mxu0 0.0
        %635 = vmatmul.mubr.f32.gmra.mrb[0].mxu0 %v449
        %v636 = vpop.f32.mrb[0].mxu0
        %v637 = vadd.f32 %v396, %v636
        %v638 = vpop.f32.mrb[0].mxu0
        %639 = vmatprep.mubr.f32.mxu0 0.0
        %640 = vmatmul.mubr.f32.gmra.mrb[0].mxu0 %v452
        %v641 = vpop.f32.mrb[0].mxu0
        %v642 = vadd.f32 %v401, %v641
        %v643 = vpop.f32.mrb[0].mxu0
        %644 = vmatprep.mubr.f32.mxu0 0.0
        %645 = vmatmul.mubr.f32.gmra.mrb[0].mxu0 %v455
        %v646 = vpop.f32.mrb[0].mxu0
        %v647 = vadd.f32 %v406, %v646
        %v648 = vpop.f32.mrb[0].mxu0
        %649 = vdwg.mxu0
        %v650 = vmul.f32 %v572, 0.5
        %v651 = vmul.f32 %v577, 0.5
        %v652 = vmul.f32 %v582, 0.5
        %v653 = vmul.f32 %v587, 0.5
        %v654 = vmul.f32 %v592, 0.5
        %v655 = vmul.f32 %v597, 0.5
        %v656 = vmul.f32 %v602, 0.5
        %v657 = vmul.f32 %v607, 0.5
        %v658 = vmul.f32 %v612, 0.5
        %v659 = vmul.f32 %v617, 0.5
        %v660 = vmul.f32 %v622, 0.5
        %v661 = vmul.f32 %v627, 0.5
        %v662 = vmul.f32 %v632, 0.5
        %v663 = vmul.f32 %v637, 0.5
        %v664 = vmul.f32 %v642, 0.5
        %v665 = vmul.f32 %v647, 0.5
        %v666 = vmul.f32 %v572, 0.70710677
        %v667 = vmul.f32 %v577, 0.70710677
        %v668 = vmul.f32 %v582, 0.70710677
        %v669 = vmul.f32 %v587, 0.70710677
        %v670 = vmul.f32 %v592, 0.70710677
        %v671 = vmul.f32 %v597, 0.70710677
        %v672 = vmul.f32 %v602, 0.70710677
        %v673 = vmul.f32 %v607, 0.70710677
        %v674 = vmul.f32 %v612, 0.70710677
        %v675 = vmul.f32 %v617, 0.70710677
        %v676 = vmul.f32 %v622, 0.70710677
        %v677 = vmul.f32 %v627, 0.70710677
        %v678 = vmul.f32 %v632, 0.70710677
        %v679 = vmul.f32 %v637, 0.70710677
        %v680 = vmul.f32 %v642, 0.70710677
        %v681 = vmul.f32 %v647, 0.70710677
        %v682 = verf.f32.pop %v666
        %v683 = verf.f32.pop %v667
        %v684 = verf.f32.pop %v668
        %v685 = verf.f32.pop %v669
        %v686 = verf.f32.pop %v670
        %v687 = verf.f32.pop %v671
        %v688 = verf.f32.pop %v672
        %v689 = verf.f32.pop %v673
        %v690 = verf.f32.pop %v674
        %v691 = verf.f32.pop %v675
        %v692 = verf.f32.pop %v676
        %v693 = verf.f32.pop %v677
        %v694 = verf.f32.pop %v678
        %v695 = verf.f32.pop %v679
        %v696 = verf.f32.pop %v680
        %v697 = verf.f32.pop %v681
        %v698 = vadd.f32 %v682, 1.0
        %v699 = vadd.f32 %v683, 1.0
        %v700 = vadd.f32 %v684, 1.0
        %v701 = vadd.f32 %v685, 1.0
        %v702 = vadd.f32 %v686, 1.0
        %v703 = vadd.f32 %v687, 1.0
        %v704 = vadd.f32 %v688, 1.0
        %v705 = vadd.f32 %v689, 1.0
        %v706 = vadd.f32 %v690, 1.0
        %v707 = vadd.f32 %v691, 1.0
        %v708 = vadd.f32 %v692, 1.0
        %v709 = vadd.f32 %v693, 1.0
        %v710 = vadd.f32 %v694, 1.0
        %v711 = vadd.f32 %v695, 1.0
        %v712 = vadd.f32 %v696, 1.0
        %v713 = vadd.f32 %v697, 1.0
        %v714 = vmul.f32 %v650, %v698
        %v715 = vmul.f32 %v651, %v699
        %v716 = vmul.f32 %v652, %v700
        %v717 = vmul.f32 %v653, %v701
        %v718 = vmul.f32 %v654, %v702
        %v719 = vmul.f32 %v655, %v703
        %v720 = vmul.f32 %v656, %v704
        %v721 = vmul.f32 %v657, %v705
        %v722 = vmul.f32 %v658, %v706
        %v723 = vmul.f32 %v659, %v707
        %v724 = vmul.f32 %v660, %v708
        %v725 = vmul.f32 %v661, %v709
        %v726 = vmul.f32 %v662, %v710
        %v727 = vmul.f32 %v663, %v711
        %v728 = vmul.f32 %v664, %v712
        %v729 = vmul.f32 %v665, %v713
        %v730 = vld [vmem:[%s3] sm:$0xff]
        %v731 = vld [vmem:[%s3 + $0x8] sm:$0xff]
        %v732 = vld [vmem:[%s3 + $0x10] sm:$0xff]
        %v733 = vld [vmem:[%s3 + $0x18] sm:$0xff]
        %v734 = vld [vmem:[%s3 + $0x20] sm:$0xff]
        %v735 = vld [vmem:[%s3 + $0x28] sm:$0xff]
        %v736 = vld [vmem:[%s3 + $0x30] sm:$0xff]
        %v737 = vld [vmem:[%s3 + $0x38] sm:$0xff]
        %v738 = vld [vmem:[%s3 + $0x40] sm:$0xff]
        %v739 = vld [vmem:[%s3 + $0x48] sm:$0xff]
        %v740 = vld [vmem:[%s3 + $0x50] sm:$0xff]
        %v741 = vld [vmem:[%s3 + $0x58] sm:$0xff]
        %v742 = vld [vmem:[%s3 + $0x60] sm:$0xff]
        %v743 = vld [vmem:[%s3 + $0x68] sm:$0xff]
        %v744 = vld [vmem:[%s3 + $0x70] sm:$0xff]
        %v745 = vld [vmem:[%s3 + $0x78] sm:$0xff]
        %v746 = vld [vmem:[%s4] sm:$0xff]
        %v747 = vld [vmem:[%s4 + $0x8] sm:$0xff]
        %v748 = vld [vmem:[%s4 + $0x10] sm:$0xff]
        %v749 = vld [vmem:[%s4 + $0x18] sm:$0xff]
        %v750 = vld [vmem:[%s4 + $0x20] sm:$0xff]
        %v751 = vld [vmem:[%s4 + $0x28] sm:$0xff]
        %v752 = vld [vmem:[%s4 + $0x30] sm:$0xff]
        %v753 = vld [vmem:[%s4 + $0x38] sm:$0xff]
        %v754 = vld [vmem:[%s4 + $0x40] sm:$0xff]
        %v755 = vld [vmem:[%s4 + $0x48] sm:$0xff]
        %v756 = vld [vmem:[%s4 + $0x50] sm:$0xff]
        %v757 = vld [vmem:[%s4 + $0x58] sm:$0xff]
        %v758 = vld [vmem:[%s4 + $0x60] sm:$0xff]
        %v759 = vld [vmem:[%s4 + $0x68] sm:$0xff]
        %v760 = vld [vmem:[%s4 + $0x70] sm:$0xff]
        %v761 = vld [vmem:[%s4 + $0x78] sm:$0xff]
        %763 = vset.pattern.permute.xlu0 0
        %764 = vperm.xlu0 %763, %v746
        %v765 = vpop.permute.xlu0 %764
        %768 = vset.pattern.permute.xlu0 0
        %769 = vperm.xlu0 %768, %v747
        %v770 = vpop.permute.xlu0 %769
        %773 = vset.pattern.permute.xlu0 0
        %774 = vperm.xlu0 %773, %v748
        %v775 = vpop.permute.xlu0 %774
        %778 = vset.pattern.permute.xlu0 0
        %779 = vperm.xlu0 %778, %v749
        %v780 = vpop.permute.xlu0 %779
        %783 = vset.pattern.permute.xlu0 0
        %784 = vperm.xlu0 %783, %v750
        %v785 = vpop.permute.xlu0 %784
        %788 = vset.pattern.permute.xlu0 0
        %789 = vperm.xlu0 %788, %v751
        %v790 = vpop.permute.xlu0 %789
        %793 = vset.pattern.permute.xlu0 0
        %794 = vperm.xlu0 %793, %v752
        %v795 = vpop.permute.xlu0 %794
        %798 = vset.pattern.permute.xlu0 0
        %799 = vperm.xlu0 %798, %v753
        %v800 = vpop.permute.xlu0 %799
        %803 = vset.pattern.permute.xlu0 0
        %804 = vperm.xlu0 %803, %v754
        %v805 = vpop.permute.xlu0 %804
        %808 = vset.pattern.permute.xlu0 0
        %809 = vperm.xlu0 %808, %v755
        %v810 = vpop.permute.xlu0 %809
        %813 = vset.pattern.permute.xlu0 0
        %814 = vperm.xlu0 %813, %v756
        %v815 = vpop.permute.xlu0 %814
        %818 = vset.pattern.permute.xlu0 0
        %819 = vperm.xlu0 %818, %v757
        %v820 = vpop.permute.xlu0 %819
        %823 = vset.pattern.permute.xlu0 0
        %824 = vperm.xlu0 %823, %v758
        %v825 = vpop.permute.xlu0 %824
        %828 = vset.pattern.permute.xlu0 0
        %829 = vperm.xlu0 %828, %v759
        %v830 = vpop.permute.xlu0 %829
        %833 = vset.pattern.permute.xlu0 0
        %834 = vperm.xlu0 %833, %v760
        %v835 = vpop.permute.xlu0 %834
        %838 = vset.pattern.permute.xlu0 0
        %839 = vperm.xlu0 %838, %v761
        %v840 = vpop.permute.xlu0 %839
        %842 = vmatprep.subr.mxu0 0.0
        %843 = vmatpush1.msra.mxu0 %v714
        %844 = vmatprep.subr.mxu0 0.0
        %845 = vmatpush1.msra.mxu0 %v715
        %846 = vmatprep.subr.mxu0 0.0
        %847 = vmatpush1.msra.mxu0 %v716
        %848 = vmatprep.subr.mxu0 0.0
        %849 = vmatpush1.msra.mxu0 %v717
        %850 = vmatprep.subr.mxu0 0.0
        %851 = vmatpush1.msra.mxu0 %v718
        %852 = vmatprep.subr.mxu0 0.0
        %853 = vmatpush1.msra.mxu0 %v719
        %854 = vmatprep.subr.mxu0 0.0
        %855 = vmatpush1.msra.mxu0 %v720
        %856 = vmatprep.subr.mxu0 0.0
        %857 = vmatpush1.msra.mxu0 %v721
        %858 = vmatprep.subr.mxu0 0.0
        %859 = vmatpush1.msra.mxu0 %v722
        %860 = vmatprep.subr.mxu0 0.0
        %861 = vmatpush1.msra.mxu0 %v723
        %862 = vmatprep.subr.mxu0 0.0
        %863 = vmatpush1.msra.mxu0 %v724
        %864 = vmatprep.subr.mxu0 0.0
        %865 = vmatpush1.msra.mxu0 %v725
        %866 = vmatprep.subr.mxu0 0.0
        %867 = vmatpush1.msra.mxu0 %v726
        %868 = vmatprep.subr.mxu0 0.0
        %869 = vmatpush1.msra.mxu0 %v727
        %870 = vmatprep.subr.mxu0 0.0
        %871 = vmatpush1.msra.mxu0 %v728
        %872 = vmatprep.subr.mxu0 0.0
        %873 = vmatpush1.msra.mxu0 %v729
        %874 = vmatprep.subr.mxu0 0.0
        %875 = vmatpush1.msra.mxu0 0.0
        %876 = vmatprep.subr.mxu0 0.0
        %877 = vmatpush1.msra.mxu0 0.0
        %878 = vmatprep.subr.mxu0 0.0
        %879 = vmatpush1.msra.mxu0 0.0
        %880 = vmatprep.subr.mxu0 0.0
        %881 = vmatpush1.msra.mxu0 0.0
        %882 = vmatprep.subr.mxu0 0.0
        %883 = vmatpush1.msra.mxu0 0.0
        %884 = vmatprep.subr.mxu0 0.0
        %885 = vmatpush1.msra.mxu0 0.0
        %886 = vmatprep.subr.mxu0 0.0
        %887 = vmatpush1.msra.mxu0 0.0
        %888 = vmatprep.subr.mxu0 0.0
        %889 = vmatpush1.msra.mxu0 0.0
        %890 = vmatprep.subr.mxu0 0.0
        %891 = vmatpush1.msra.mxu0 0.0
        %892 = vmatprep.subr.mxu0 0.0
        %893 = vmatpush1.msra.mxu0 0.0
        %894 = vmatprep.subr.mxu0 0.0
        %895 = vmatpush1.msra.mxu0 0.0
        %896 = vmatprep.subr.mxu0 0.0
        %897 = vmatpush1.msra.mxu0 0.0
        %898 = vmatprep.subr.mxu0 0.0
        %899 = vmatpush1.msra.mxu0 0.0
        %900 = vmatprep.subr.mxu0 0.0
        %901 = vmatpush1.msra.mxu0 0.0
        %902 = vmatprep.subr.mxu0 0.0
        %903 = vmatpush1.msra.mxu0 0.0
        %904 = vmatprep.subr.mxu0 0.0
        %905 = vmatpush1.msra.mxu0 0.0
        %906 = vmatprep.mubr.f32.mxu0 0.0
        %907 = vmatmul.mubr.f32.gmra.mrb[0].mxu0 %v730
        %v908 = vpop.f32.mrb[0].mxu0
        %v909 = vadd.f32 %v765, %v908
        %v910 = vpop.f32.mrb[0].mxu0
        %911 = vmatprep.mubr.f32.mxu0 0.0
        %912 = vmatmul.mubr.f32.gmra.mrb[0].mxu0 %v731
        %v913 = vpop.f32.mrb[0].mxu0
        %v914 = vadd.f32 %v770, %v913
        %v915 = vpop.f32.mrb[0].mxu0
        %916 = vmatprep.mubr.f32.mxu0 0.0
        %917 = vmatmul.mubr.f32.gmra.mrb[0].mxu0 %v732
        %v918 = vpop.f32.mrb[0].mxu0
        %v919 = vadd.f32 %v775, %v918
        %v920 = vpop.f32.mrb[0].mxu0
        %921 = vmatprep.mubr.f32.mxu0 0.0
        %922 = vmatmul.mubr.f32.gmra.mrb[0].mxu0 %v733
        %v923 = vpop.f32.mrb[0].mxu0
        %v924 = vadd.f32 %v780, %v923
        %v925 = vpop.f32.mrb[0].mxu0
        %926 = vmatprep.mubr.f32.mxu0 0.0
        %927 = vmatmul.mubr.f32.gmra.mrb[0].mxu0 %v734
        %v928 = vpop.f32.mrb[0].mxu0
        %v929 = vadd.f32 %v785, %v928
        %v930 = vpop.f32.mrb[0].mxu0
        %931 = vmatprep.mubr.f32.mxu0 0.0
        %932 = vmatmul.mubr.f32.gmra.mrb[0].mxu0 %v735
        %v933 = vpop.f32.mrb[0].mxu0
        %v934 = vadd.f32 %v790, %v933
        %v935 = vpop.f32.mrb[0].mxu0
        %936 = vmatprep.mubr.f32.mxu0 0.0
        %937 = vmatmul.mubr.f32.gmra.mrb[0].mxu0 %v736
        %v938 = vpop.f32.mrb[0].mxu0
        %v939 = vadd.f32 %v795, %v938
        %v940 = vpop.f32.mrb[0].mxu0
        %941 = vmatprep.mubr.f32.mxu0 0.0
        %942 = vmatmul.mubr.f32.gmra.mrb[0].mxu0 %v737
        %v943 = vpop.f32.mrb[0].mxu0
        %v944 = vadd.f32 %v800, %v943
        %v945 = vpop.f32.mrb[0].mxu0
        %946 = vmatprep.mubr.f32.mxu0 0.0
        %947 = vmatmul.mubr.f32.gmra.mrb[0].mxu0 %v738
        %v948 = vpop.f32.mrb[0].mxu0
        %v949 = vadd.f32 %v805, %v948
        %v950 = vpop.f32.mrb[0].mxu0
        %951 = vmatprep.mubr.f32.mxu0 0.0
        %952 = vmatmul.mubr.f32.gmra.mrb[0].mxu0 %v739
        %v953 = vpop.f32.mrb[0].mxu0
        %v954 = vadd.f32 %v810, %v953
        %v955 = vpop.f32.mrb[0].mxu0
        %956 = vmatprep.mubr.f32.mxu0 0.0
        %957 = vmatmul.mubr.f32.gmra.mrb[0].mxu0 %v740
        %v958 = vpop.f32.mrb[0].mxu0
        %v959 = vadd.f32 %v815, %v958
        %v960 = vpop.f32.mrb[0].mxu0
        %961 = vmatprep.mubr.f32.mxu0 0.0
        %962 = vmatmul.mubr.f32.gmra.mrb[0].mxu0 %v741
        %v963 = vpop.f32.mrb[0].mxu0
        %v964 = vadd.f32 %v820, %v963
        %v965 = vpop.f32.mrb[0].mxu0
        %966 = vmatprep.mubr.f32.mxu0 0.0
        %967 = vmatmul.mubr.f32.gmra.mrb[0].mxu0 %v742
        %v968 = vpop.f32.mrb[0].mxu0
        %v969 = vadd.f32 %v825, %v968
        %v970 = vpop.f32.mrb[0].mxu0
        %971 = vmatprep.mubr.f32.mxu0 0.0
        %972 = vmatmul.mubr.f32.gmra.mrb[0].mxu0 %v743
        %v973 = vpop.f32.mrb[0].mxu0
        %v974 = vadd.f32 %v830, %v973
        %v975 = vpop.f32.mrb[0].mxu0
        %976 = vmatprep.mubr.f32.mxu0 0.0
        %977 = vmatmul.mubr.f32.gmra.mrb[0].mxu0 %v744
        %v978 = vpop.f32.mrb[0].mxu0
        %v979 = vadd.f32 %v835, %v978
        %v980 = vpop.f32.mrb[0].mxu0
        %981 = vmatprep.mubr.f32.mxu0 0.0
        %982 = vmatmul.mubr.f32.gmra.mrb[0].mxu0 %v745
        %v983 = vpop.f32.mrb[0].mxu0
        %v984 = vadd.f32 %v840, %v983
        %v985 = vpop.f32.mrb[0].mxu0
        %986 = vdwg.mxu0
        %v987 = vmul.f32 %v909, 0.5
        %v988 = vmul.f32 %v914, 0.5
        %v989 = vmul.f32 %v919, 0.5
        %v990 = vmul.f32 %v924, 0.5
        %v991 = vmul.f32 %v929, 0.5
        %v992 = vmul.f32 %v934, 0.5
        %v993 = vmul.f32 %v939, 0.5
        %v994 = vmul.f32 %v944, 0.5
        %v995 = vmul.f32 %v949, 0.5
        %v996 = vmul.f32 %v954, 0.5
        %v997 = vmul.f32 %v959, 0.5
        %v998 = vmul.f32 %v964, 0.5
        %v999 = vmul.f32 %v969, 0.5
        %v1000 = vmul.f32 %v974, 0.5
        %v1001 = vmul.f32 %v979, 0.5
        %v1002 = vmul.f32 %v984, 0.5
        %v1003 = vmul.f32 %v909, 0.70710677
        %v1004 = vmul.f32 %v914, 0.70710677
        %v1005 = vmul.f32 %v919, 0.70710677
        %v1006 = vmul.f32 %v924, 0.70710677
        %v1007 = vmul.f32 %v929, 0.70710677
        %v1008 = vmul.f32 %v934, 0.70710677
        %v1009 = vmul.f32 %v939, 0.70710677
        %v1010 = vmul.f32 %v944, 0.70710677
        %v1011 = vmul.f32 %v949, 0.70710677
        %v1012 = vmul.f32 %v954, 0.70710677
        %v1013 = vmul.f32 %v959, 0.70710677
        %v1014 = vmul.f32 %v964, 0.70710677
        %v1015 = vmul.f32 %v969, 0.70710677
        %v1016 = vmul.f32 %v974, 0.70710677
        %v1017 = vmul.f32 %v979, 0.70710677
        %v1018 = vmul.f32 %v984, 0.70710677
        %v1019 = verf.f32.pop %v1003
        %v1020 = verf.f32.pop %v1004
        %v1021 = verf.f32.pop %v1005
        %v1022 = verf.f32.pop %v1006
        %v1023 = verf.f32.pop %v1007
        %v1024 = verf.f32.pop %v1008
        %v1025 = verf.f32.pop %v1009
        %v1026 = verf.f32.pop %v1010
        %v1027 = verf.f32.pop %v1011
        %v1028 = verf.f32.pop %v1012
        %v1029 = verf.f32.pop %v1013
        %v1030 = verf.f32.pop %v1014
        %v1031 = verf.f32.pop %v1015
        %v1032 = verf.f32.pop %v1016
        %v1033 = verf.f32.pop %v1017
        %v1034 = verf.f32.pop %v1018
        %v1035 = vadd.f32 %v1019, 1.0
        %v1036 = vadd.f32 %v1020, 1.0
        %v1037 = vadd.f32 %v1021, 1.0
        %v1038 = vadd.f32 %v1022, 1.0
        %v1039 = vadd.f32 %v1023, 1.0
        %v1040 = vadd.f32 %v1024, 1.0
        %v1041 = vadd.f32 %v1025, 1.0
        %v1042 = vadd.f32 %v1026, 1.0
        %v1043 = vadd.f32 %v1027, 1.0
        %v1044 = vadd.f32 %v1028, 1.0
        %v1045 = vadd.f32 %v1029, 1.0
        %v1046 = vadd.f32 %v1030, 1.0
        %v1047 = vadd.f32 %v1031, 1.0
        %v1048 = vadd.f32 %v1032, 1.0
        %v1049 = vadd.f32 %v1033, 1.0
        %v1050 = vadd.f32 %v1034, 1.0
        %v1051 = vmul.f32 %v987, %v1035
        %v1052 = vmul.f32 %v988, %v1036
        %v1053 = vmul.f32 %v989, %v1037
        %v1054 = vmul.f32 %v990, %v1038
        %v1055 = vmul.f32 %v991, %v1039
        %v1056 = vmul.f32 %v992, %v1040
        %v1057 = vmul.f32 %v993, %v1041
        %v1058 = vmul.f32 %v994, %v1042
        %v1059 = vmul.f32 %v995, %v1043
        %v1060 = vmul.f32 %v996, %v1044
        %v1061 = vmul.f32 %v997, %v1045
        %v1062 = vmul.f32 %v998, %v1046
        %v1063 = vmul.f32 %v999, %v1047
        %v1064 = vmul.f32 %v1000, %v1048
        %v1065 = vmul.f32 %v1001, %v1049
        %v1066 = vmul.f32 %v1002, %v1050
        %v1067 = vld [vmem:[%s5] sm:$0x1]
        %v1068 = vld [vmem:[#allocation2] sm:$0x1]
        %1070 = vset.pattern.permute.xlu0 0
        %1071 = vperm.xlu0 %1070, %v1068
        %v1072 = vpop.permute.xlu0 %1071
        %v1074 = vlaneseq
        %v1075 = vshrl.u32 %v1074, 7
        %v1076 = vsub.s32 0, %v1075
        %v1077 = vrot.slane %v1072, %v1076
        %1078 = vmatprep.subr.mxu0 0.0
        %1079 = vmatpush1.msra.mxu0 %v1051
        %1080 = vmatprep.subr.mxu0 0.0
        %1081 = vmatpush1.msra.mxu0 %v1052
        %1082 = vmatprep.subr.mxu0 0.0
        %1083 = vmatpush1.msra.mxu0 %v1053
        %1084 = vmatprep.subr.mxu0 0.0
        %1085 = vmatpush1.msra.mxu0 %v1054
        %1086 = vmatprep.subr.mxu0 0.0
        %1087 = vmatpush1.msra.mxu0 %v1055
        %1088 = vmatprep.subr.mxu0 0.0
        %1089 = vmatpush1.msra.mxu0 %v1056
        %1090 = vmatprep.subr.mxu0 0.0
        %1091 = vmatpush1.msra.mxu0 %v1057
        %1092 = vmatprep.subr.mxu0 0.0
        %1093 = vmatpush1.msra.mxu0 %v1058
        %1094 = vmatprep.subr.mxu0 0.0
        %1095 = vmatpush1.msra.mxu0 %v1059
        %1096 = vmatprep.subr.mxu0 0.0
        %1097 = vmatpush1.msra.mxu0 %v1060
        %1098 = vmatprep.subr.mxu0 0.0
        %1099 = vmatpush1.msra.mxu0 %v1061
        %1100 = vmatprep.subr.mxu0 0.0
        %1101 = vmatpush1.msra.mxu0 %v1062
        %1102 = vmatprep.subr.mxu0 0.0
        %1103 = vmatpush1.msra.mxu0 %v1063
        %1104 = vmatprep.subr.mxu0 0.0
        %1105 = vmatpush1.msra.mxu0 %v1064
        %1106 = vmatprep.subr.mxu0 0.0
        %1107 = vmatpush1.msra.mxu0 %v1065
        %1108 = vmatprep.subr.mxu0 0.0
        %1109 = vmatpush1.msra.mxu0 %v1066
        %1110 = vmatprep.subr.mxu0 0.0
        %1111 = vmatpush1.msra.mxu0 0.0
        %1112 = vmatprep.subr.mxu0 0.0
        %1113 = vmatpush1.msra.mxu0 0.0
        %1114 = vmatprep.subr.mxu0 0.0
        %1115 = vmatpush1.msra.mxu0 0.0
        %1116 = vmatprep.subr.mxu0 0.0
        %1117 = vmatpush1.msra.mxu0 0.0
        %1118 = vmatprep.subr.mxu0 0.0
        %1119 = vmatpush1.msra.mxu0 0.0
        %1120 = vmatprep.subr.mxu0 0.0
        %1121 = vmatpush1.msra.mxu0 0.0
        %1122 = vmatprep.subr.mxu0 0.0
        %1123 = vmatpush1.msra.mxu0 0.0
        %1124 = vmatprep.subr.mxu0 0.0
        %1125 = vmatpush1.msra.mxu0 0.0
        %1126 = vmatprep.subr.mxu0 0.0
        %1127 = vmatpush1.msra.mxu0 0.0
        %1128 = vmatprep.subr.mxu0 0.0
        %1129 = vmatpush1.msra.mxu0 0.0
        %1130 = vmatprep.subr.mxu0 0.0
        %1131 = vmatpush1.msra.mxu0 0.0
        %1132 = vmatprep.subr.mxu0 0.0
        %1133 = vmatpush1.msra.mxu0 0.0
        %1134 = vmatprep.subr.mxu0 0.0
        %1135 = vmatpush1.msra.mxu0 0.0
        %1136 = vmatprep.subr.mxu0 0.0
        %1137 = vmatpush1.msra.mxu0 0.0
        %1138 = vmatprep.subr.mxu0 0.0
        %1139 = vmatpush1.msra.mxu0 0.0
        %1140 = vmatprep.subr.mxu0 0.0
        %1141 = vmatpush1.msra.mxu0 0.0
        %1142 = vmatprep.mubr.f32.mxu0 0.0
        %1143 = vmatmul.mubr.f32.gmra.mrb[0].mxu0 %v1067
        %v1144 = vpop.f32.mrb[0].mxu0
        %v1145 = vadd.f32 %v1077, %v1144
        %v1146 = vpop.f32.mrb[0].mxu0
        %1147 = vdwg.mxu0
        %v1148 = vxor.u32 %v1145, 2147483648
        %v1149 = vmul.f32 %v1148, 1.442695
        %v1150 = vpow.pop %v1149
        %v1151 = vadd.f32 %v1150, 1.0
        %v1152 = vrcp.pop %v1151
        %v1153 = vmul.f32 1.0, %v1152
        %1154 = vst [vmem:[%s273] sm:$0x1] %v1153
        %s1155 = sand.u32 %s183, 1
        %s1156 = scalar_lea.sflag [#allocation4], %s1155
        %s1157 = sand.u32 %s183, 1
        %s1158 = scalar_lea.vmem [#allocation3], %s1157
        // Predicated region
        $region49: #{mlp_head_forward.1} parent=47 // pred_check
          %p1159 = pneg %p193
        $region50: #{mlp_head_forward.1} parent=47 // pred_check_branch
          %1161 = sbr.rel (%p1159) target = $region52
        $region51: #{mlp_head_forward.1} parent=47 // pred_region
          %s1163 = ssub.s32 16, 16
          %1164 = vsyncadd %s1156, %s1163
          %s1165 = smul.addr %s23, 16
          %s1166 = scalar_lea.hbm %s7, %s1165
          %s1168 = sshll.u32 %s1158, 4
          %s1169 = int_to_ptr.vmem [resolvable:$true] %s1168
          %1171 = dma.vmem_to_hbm [thread:$0]  %s1169, 16, %s1166, %s1156
        $region52: #{mlp_head_forward.1} parent=47 // pred_fallthru
          _
      $region48: #{mlp_head_forward.1} parent=5 // pred_fallthru
        _
      %p1172 = scmp.le.s32.totalorder 2, %s18
      // Predicated region
      $region53: #{mlp_head_forward.1} parent=5 // pred_check
        %p1173 = pneg %p1172
      $region54: #{mlp_head_forward.1} parent=5 // pred_check_branch
        %1175 = sbr.rel (%p1173) target = $region56
      $region55: #{mlp_head_forward.1} parent=5 // pred_region
        %s1176 = ssub.s32 %s18, 2
        // Predicated region
        $region57: #{mlp_head_forward.1} parent=55 // pred_check
          %p1177 = pneg %p199
        $region58: #{mlp_head_forward.1} parent=55 // pred_check_branch
          %1179 = sbr.rel (%p1177) target = $region60
        $region59: #{mlp_head_forward.1} parent=55 // pred_region
          %s1180 = sand.u32 %s184, 1
          %s1181 = scalar_lea.sflag [#allocation4], %s1180
          %s1182 = sand.u32 %s184, 1
          %s1183 = scalar_lea.vmem [#allocation3], %s1182
          %1184 = dma.done %s1181, 16
        $region60: #{mlp_head_forward.1} parent=55 // pred_fallthru
          _
      $region56: #{mlp_head_forward.1} parent=5 // pred_fallthru
        _
    $region6: #{mlp_head_forward.1} parent=1 // loop_footer
      %s22 = sadd.s32 1, %s18
    $region7: #{mlp_head_forward.1} parent=1 // loop_footer_branch
      %17 = sbr.rel target = $region3
    $region8: #{mlp_head_forward.1} parent=1 // loop_exit
      _
    %1185 = vsyncpa [#allocation4], 1
    %s1186 = scalar_lea.sflag [#allocation4], 1
    %1187 = vsyncpa %s1186, 1

</llo_original>
